<compile_context>
chip_gen: v6e
topology: v6e:2x2x1
jax: 0.10.0
libtpu: 0.0.40
codegen_flags: <defaults>
</compile_context>

<pallas_src>
import functools

import jax
import jax.numpy as jnp
from jax.experimental import pallas as pl
from jax.experimental.pallas import tpu as pltpu

_LANES = 128          # boxes per sublane row (lane axis)
_MAX_SUB_ROWS = 256   # max sublane rows per grid step -> 32768 boxes / 512 KB per input block
# Identical unit boxes for pred/target padding -> loss contribution is exactly 0.0 in f32.
_PAD_BOX = (0.0, 0.0, 1.0, 1.0)


def _round_up(x, m):
    return -(-x // m) * m


def _compute_iou(p, t, loss_type):
    """p / t: (4, S, 128) f32 tiles, rows = (cx, cy, w, h). Returns (loss, iou)."""
    px, py, pw, ph = p[0], p[1], p[2], p[3]
    tx, ty, tw, th = t[0], t[1], t[2], t[3]

    phw, phh = pw * 0.5, ph * 0.5
    thw, thh = tw * 0.5, th * 0.5

    # intersection top-left / bottom-right
    tl_x = jnp.maximum(px - phw, tx - thw)
    tl_y = jnp.maximum(py - phh, ty - thh)
    br_x = jnp.minimum(px + phw, tx + thw)
    br_y = jnp.minimum(py + phh, ty + thh)

    area_p = pw * ph
    area_g = tw * th

    en = ((tl_x < br_x) & (tl_y < br_y)).astype(jnp.float32)
    area_i = (br_x - tl_x) * (br_y - tl_y) * en
    area_u = area_p + area_g - area_i
    # exact reciprocal -> EUP slot instead of a VALU divide sequence
    iou = area_i * pl.reciprocal(area_u + 1e-16)

    if loss_type == "iou":
        return 1.0 - iou * iou, iou

    # giou
    c_tl_x = jnp.minimum(px - phw, tx - thw)
    c_tl_y = jnp.minimum(py - phh, ty - thh)
    c_br_x = jnp.maximum(px + phw, tx + thw)
    c_br_y = jnp.maximum(py + phh, ty + thh)
    area_c = (c_br_x - c_tl_x) * (c_br_y - c_tl_y)
    giou = iou - (area_c - area_u) * pl.reciprocal(jnp.maximum(area_c, 1e-16))
    loss = 1.0 - jnp.clip(giou, -1.0, 1.0)
    return loss, giou


def _iou_kernel(pred_ref, tgt_ref, *out_refs, loss_type, emit_loss,
                emit_partial, emit_iou):
    loss, iou = _compute_iou(pred_ref[...], tgt_ref[...], loss_type)
    i = 0
    if emit_loss:
        out_refs[i][...] = loss
        i += 1
    if emit_partial:
        # fold the S sublane rows into an (8, 128) lane-wise partial sum
        # (S is always a multiple of 8); static unrolled adds, pure VPU work.
        s = loss.shape[0]
        part = loss[0:8]
        for j in range(8, s, 8):
            part = part + loss[j:j + 8]
        out_refs[i][...] = part
        i += 1
    if emit_iou:
        out_refs[i][...] = iou


def _run_kernel(pred_t, tgt_t, *, loss_type, emit_loss, emit_partial,
                emit_iou, s):
    # pred_t / tgt_t: (4, R, 128) f32; block = (4, S, 128) -> dense tiles
    _, r, _ = pred_t.shape
    nblk = r // s
    grid = (nblk,)

    in_specs = [
        pl.BlockSpec((4, s, _LANES), lambda i: (0, i, 0)),
        pl.BlockSpec((4, s, _LANES), lambda i: (0, i, 0)),
    ]
    out_shapes, out_specs = [], []
    if emit_loss:
        out_shapes.append(jax.ShapeDtypeStruct((r, _LANES), jnp.float32))
        out_specs.append(pl.BlockSpec((s, _LANES), lambda i: (i, 0)))
    if emit_partial:
        out_shapes.append(jax.ShapeDtypeStruct((8, nblk * _LANES), jnp.float32))
        out_specs.append(pl.BlockSpec((8, _LANES), lambda i: (0, i)))
    if emit_iou:
        out_shapes.append(jax.ShapeDtypeStruct((r, _LANES), jnp.float32))
        out_specs.append(pl.BlockSpec((s, _LANES), lambda i: (i, 0)))

    kernel = functools.partial(
        _iou_kernel, loss_type=loss_type, emit_loss=emit_loss,
        emit_partial=emit_partial, emit_iou=emit_iou)

    return pl.pallas_call(
        kernel,
        out_shape=tuple(out_shapes),
        grid_spec=pltpu.PrefetchScalarGridSpec(
            num_scalar_prefetch=0,
            grid=grid,
            in_specs=in_specs,
            out_specs=tuple(out_specs),
        ),
        compiler_params=pltpu.CompilerParams(
            dimension_semantics=("parallel",)
        ),
    )(pred_t, tgt_t)


def _pack(boxes, n_pad, r):
    """(n, 4) -> (4, r, 128) with identical-unit-box padding."""
    pad_rows = n_pad - boxes.shape[0]
    pad_blk = jnp.broadcast_to(jnp.asarray(_PAD_BOX, jnp.float32), (pad_rows, 4))
    packed = jnp.concatenate([boxes, pad_blk], axis=0)      # (n_pad, 4)
    # TODO(synk): if the producer emits boxes already in (4, R, 128) layout,
    # this transpose pass (one extra HBM read+write) disappears.
    return packed.T.reshape(4, r, _LANES)


def iou_loss(pred, target, *, loss_weight=1.0, reduction="none",
             loss_type="iou", return_iou=False, avg_factor=1.0):
    assert reduction in [None, "none", "mean", "sum"]
    assert loss_type in ["iou", "giou"]
    assert pred.shape[0] == target.shape[0], f"expect {pred.shape} == {target.shape}"
    if pred.shape[0] == 0:
        # matches torch: pred.sum() * 0.0
        return jnp.sum(pred) * 0.0

    pred = pred.reshape(-1, 4).astype(jnp.float32)
    target = target.reshape(-1, 4).astype(jnp.float32)
    n = pred.shape[0]

    # Tile choice: split the sublane rows as evenly as possible into blocks of
    # at most _MAX_SUB_ROWS rows; every block is a multiple of 8 sublanes.
    r_raw = -(-n // _LANES)                       # rows of 128 boxes
    nblk = -(-r_raw // _MAX_SUB_ROWS)             # number of grid steps
    s = _round_up(-(-r_raw // nblk), 8)           # sublane rows per block
    r = s * nblk
    n_pad = r * _LANES

    pred_t = _pack(pred, n_pad, r)
    tgt_t = _pack(target, n_pad, r)

    fuse_reduce = reduction in ("mean", "sum")
    outs = _run_kernel(pred_t, tgt_t, loss_type=loss_type,
                       emit_loss=not fuse_reduce, emit_partial=fuse_reduce,
                       emit_iou=return_iou, s=s)

    idx = 0
    if fuse_reduce:
        # padded boxes contribute exactly 0 -> plain sum of the partials.
        total = jnp.sum(outs[idx])
        idx += 1
        loss = total / n if reduction == "mean" else total
    else:
        loss = outs[idx].reshape(-1)[:n]
        idx += 1

    out = loss_weight * loss / avg_factor
    if return_iou:
        iou = outs[idx].reshape(-1)[:n]
        return out, iou
    return out


def _reference(pred, target, loss_weight=1.0, reduction="none",
               loss_type="iou", avg_factor=1.0):
    """Pure-JAX reference of the PyTorch forward; returns (loss, iou)."""
    pred = pred.reshape(-1, 4).astype(jnp.float32)
    target = target.reshape(-1, 4).astype(jnp.float32)
    tl = jnp.maximum(pred[:, :2] - pred[:, 2:] / 2, target[:, :2] - target[:, 2:] / 2)
    br = jnp.minimum(pred[:, :2] + pred[:, 2:] / 2, target[:, :2] + target[:, 2:] / 2)
    area_p = jnp.prod(pred[:, 2:], axis=1)
    area_g = jnp.prod(target[:, 2:], axis=1)
    en = jnp.prod((tl < br).astype(jnp.float32), axis=1)
    area_i = jnp.prod(br - tl, axis=1) * en
    area_u = area_p + area_g - area_i
    iou = area_i / (area_u + 1e-16)
    if loss_type == "iou":
        loss = 1 - iou ** 2
        iou_out = iou
    else:
        c_tl = jnp.minimum(pred[:, :2] - pred[:, 2:] / 2, target[:, :2] - target[:, 2:] / 2)
        c_br = jnp.maximum(pred[:, :2] + pred[:, 2:] / 2, target[:, :2] + target[:, 2:] / 2)
        area_c = jnp.prod(c_br - c_tl, axis=1)
        giou = iou - (area_c - area_u) / jnp.maximum(area_c, 1e-16)
        loss = 1 - jnp.clip(giou, -1.0, 1.0)
        iou_out = giou
    if reduction == "mean":
        loss = jnp.mean(loss)
    elif reduction == "sum":
        loss = jnp.sum(loss)
    return loss_weight * loss / avg_factor, iou_out


def _make_boxes(key, n):
    k1, k2 = jax.random.split(key)
    return jnp.concatenate(
        [jax.random.uniform(k1, (n, 2)) * 16.0,
         jax.random.uniform(k2, (n, 2)) * 8.0 + 0.5], axis=1)


if __name__ == "__main__":
    key = jax.random.PRNGKey(0)
    kp, kt, kp2, kt2 = jax.random.split(key, 4)

    ok = True

    # small case: n=8 boxes, default config (reduction='none', loss_type='iou')
    pred = _make_boxes(kp, 8)
    target = _make_boxes(kt, 8)
    out = jax.block_until_ready(iou_loss(pred, target))
    ref, _ = _reference(pred, target)
    ok &= bool(jnp.allclose(out, ref, atol=1e-5, rtol=1e-5))

    # giou + mean reduction + avg_factor (fused in-kernel partial reduction)
    out_g = jax.block_until_ready(
        iou_loss(pred, target, reduction="mean", loss_type="giou", avg_factor=2.0))
    ref_g, _ = _reference(pred, target, reduction="mean", loss_type="giou",
                          avg_factor=2.0)
    ok &= bool(jnp.allclose(out_g, ref_g, atol=1e-5, rtol=1e-5))

    # return_iou=True path (loss + iou outputs), non-multiple-of-128 N
    pred2 = _make_boxes(kp2, 300)
    target2 = _make_boxes(kt2, 300)
    out2, iou2 = iou_loss(pred2, target2, loss_type="giou", return_iou=True)
    out2 = jax.block_until_ready(out2)
    ref2, ref_iou2 = _reference(pred2, target2, loss_type="giou")
    ok &= bool(jnp.allclose(out2, ref2, atol=1e-5, rtol=1e-5))
    ok &= bool(jnp.allclose(iou2, ref_iou2, atol=1e-5, rtol=1e-5))

    # sum reduction + return_iou (fused partials + dense iou output), 'iou' type
    out3, iou3 = iou_loss(pred2, target2, reduction="sum", loss_type="iou",
                          return_iou=True, avg_factor=3.0)
    out3 = jax.block_until_ready(out3)
    ref3, ref_iou3 = _reference(pred2, target2, reduction="sum",
                                loss_type="iou", avg_factor=3.0)
    ok &= bool(jnp.allclose(out3, ref3, atol=1e-5, rtol=1e-5))
    ok &= bool(jnp.allclose(iou3, ref_iou3, atol=1e-5, rtol=1e-5))

    if ok:
        print("KERNEL_OK")
    else:
        print("MISMATCH")
</pallas_src>

<mosaic_0001>
module attributes {stable_mosaic.version = 11 : i64} {
  func.func @_iou_kernel(%arg0: i32, %arg1: memref<4x8x128xf32, #tpu.memory_space<vmem>>, %arg2: memref<4x8x128xf32, #tpu.memory_space<vmem>>, %arg3: memref<8x128xf32, #tpu.memory_space<vmem>>) attributes {dimension_semantics = [#tpu.dimension_semantics<parallel>], iteration_bounds = array<i64: 1>, scalar_prefetch = 0 : i64, scratch_operands = 0 : i64, tpu.core_type = #tpu.core_type<tc>, window_params = [{transform_indices = @transform_0, window_bounds = array<i64: 4, 8, 128>}, {transform_indices = @transform_1, window_bounds = array<i64: 4, 8, 128>}, {transform_indices = @transform_2, window_bounds = array<i64: 8, 128>}]} {
    %c0 = arith.constant 0 : index
    %c0_0 = arith.constant 0 : index
    %c0_1 = arith.constant 0 : index
    %0 = vector.load %arg1[%c0, %c0_0, %c0_1] : memref<4x8x128xf32, #tpu.memory_space<vmem>>, vector<4x8x128xf32>
    %c0_2 = arith.constant 0 : index
    %c0_3 = arith.constant 0 : index
    %c0_4 = arith.constant 0 : index
    %1 = vector.load %arg2[%c0_2, %c0_3, %c0_4] : memref<4x8x128xf32, #tpu.memory_space<vmem>>, vector<4x8x128xf32>
    %2 = vector.extract_strided_slice %0 {offsets = [0, 0, 0], sizes = [1, 8, 128], strides = [1, 1, 1]} : vector<4x8x128xf32> to vector<1x8x128xf32>
    %3 = vector.shape_cast %2 : vector<1x8x128xf32> to vector<8x128xf32>
    %4 = vector.extract_strided_slice %0 {offsets = [1, 0, 0], sizes = [1, 8, 128], strides = [1, 1, 1]} : vector<4x8x128xf32> to vector<1x8x128xf32>
    %5 = vector.shape_cast %4 : vector<1x8x128xf32> to vector<8x128xf32>
    %6 = vector.extract_strided_slice %0 {offsets = [2, 0, 0], sizes = [1, 8, 128], strides = [1, 1, 1]} : vector<4x8x128xf32> to vector<1x8x128xf32>
    %7 = vector.shape_cast %6 : vector<1x8x128xf32> to vector<8x128xf32>
    %8 = vector.extract_strided_slice %0 {offsets = [3, 0, 0], sizes = [1, 8, 128], strides = [1, 1, 1]} : vector<4x8x128xf32> to vector<1x8x128xf32>
    %9 = vector.shape_cast %8 : vector<1x8x128xf32> to vector<8x128xf32>
    %10 = vector.extract_strided_slice %1 {offsets = [0, 0, 0], sizes = [1, 8, 128], strides = [1, 1, 1]} : vector<4x8x128xf32> to vector<1x8x128xf32>
    %11 = vector.shape_cast %10 : vector<1x8x128xf32> to vector<8x128xf32>
    %12 = vector.extract_strided_slice %1 {offsets = [1, 0, 0], sizes = [1, 8, 128], strides = [1, 1, 1]} : vector<4x8x128xf32> to vector<1x8x128xf32>
    %13 = vector.shape_cast %12 : vector<1x8x128xf32> to vector<8x128xf32>
    %14 = vector.extract_strided_slice %1 {offsets = [2, 0, 0], sizes = [1, 8, 128], strides = [1, 1, 1]} : vector<4x8x128xf32> to vector<1x8x128xf32>
    %15 = vector.shape_cast %14 : vector<1x8x128xf32> to vector<8x128xf32>
    %16 = vector.extract_strided_slice %1 {offsets = [3, 0, 0], sizes = [1, 8, 128], strides = [1, 1, 1]} : vector<4x8x128xf32> to vector<1x8x128xf32>
    %17 = vector.shape_cast %16 : vector<1x8x128xf32> to vector<8x128xf32>
    %cst = arith.constant 5.000000e-01 : f32
    %18 = vector.broadcast %cst : f32 to vector<8x128xf32>
    %19 = arith.mulf %7, %18 : vector<8x128xf32>
    %cst_5 = arith.constant 5.000000e-01 : f32
    %20 = vector.broadcast %cst_5 : f32 to vector<8x128xf32>
    %21 = arith.mulf %9, %20 : vector<8x128xf32>
    %cst_6 = arith.constant 5.000000e-01 : f32
    %22 = vector.broadcast %cst_6 : f32 to vector<8x128xf32>
    %23 = arith.mulf %15, %22 : vector<8x128xf32>
    %cst_7 = arith.constant 5.000000e-01 : f32
    %24 = vector.broadcast %cst_7 : f32 to vector<8x128xf32>
    %25 = arith.mulf %17, %24 : vector<8x128xf32>
    %26 = arith.subf %3, %19 : vector<8x128xf32>
    %27 = arith.subf %11, %23 : vector<8x128xf32>
    %28 = arith.maximumf %26, %27 : vector<8x128xf32>
    %29 = arith.subf %5, %21 : vector<8x128xf32>
    %30 = arith.subf %13, %25 : vector<8x128xf32>
    %31 = arith.maximumf %29, %30 : vector<8x128xf32>
    %32 = arith.addf %3, %19 : vector<8x128xf32>
    %33 = arith.addf %11, %23 : vector<8x128xf32>
    %34 = arith.minimumf %32, %33 : vector<8x128xf32>
    %35 = arith.addf %5, %21 : vector<8x128xf32>
    %36 = arith.addf %13, %25 : vector<8x128xf32>
    %37 = arith.minimumf %35, %36 : vector<8x128xf32>
    %38 = arith.mulf %7, %9 : vector<8x128xf32>
    %39 = arith.mulf %15, %17 : vector<8x128xf32>
    %40 = arith.cmpf olt, %28, %34 : vector<8x128xf32>
    %41 = arith.cmpf olt, %31, %37 : vector<8x128xf32>
    %42 = arith.andi %40, %41 : vector<8x128xi1>
    %43 = arith.extui %42 : vector<8x128xi1> to vector<8x128xi32>
    %44 = arith.sitofp %43 : vector<8x128xi32> to vector<8x128xf32>
    %45 = arith.subf %34, %28 : vector<8x128xf32>
    %46 = arith.subf %37, %31 : vector<8x128xf32>
    %47 = arith.mulf %45, %46 : vector<8x128xf32>
    %48 = arith.mulf %47, %44 : vector<8x128xf32>
    %49 = arith.addf %38, %39 : vector<8x128xf32>
    %50 = arith.subf %49, %48 : vector<8x128xf32>
    %cst_8 = arith.constant 1.000000e-16 : f32
    %51 = vector.broadcast %cst_8 : f32 to vector<8x128xf32>
    %52 = arith.addf %50, %51 : vector<8x128xf32>
    %53 = tpu.reciprocal %52 : vector<8x128xf32> -> vector<8x128xf32>
    %54 = arith.mulf %48, %53 : vector<8x128xf32>
    %55 = arith.mulf %54, %54 : vector<8x128xf32>
    %cst_9 = arith.constant 1.000000e+00 : f32
    %56 = vector.broadcast %cst_9 : f32 to vector<8x128xf32>
    %57 = arith.subf %56, %55 : vector<8x128xf32>
    %c0_10 = arith.constant 0 : index
    %c0_11 = arith.constant 0 : index
    %58 = vector.load %arg3[%c0_10, %c0_11] : memref<8x128xf32, #tpu.memory_space<vmem>>, vector<8x128xf32>
    tpu.vector_store %arg3[%c0_10, %c0_11], %57 {strides = array<i32>} : memref<8x128xf32, #tpu.memory_space<vmem>>, vector<8x128xf32>,
    return
  }
  func.func @transform_0(%arg0: i32) -> (i32, i32, i32) {
    %c0_i32 = arith.constant 0 : i32
    %c0_i32_0 = arith.constant 0 : i32
    %c0_i32_1 = arith.constant 0 : i32
    return %c0_i32, %arg0, %c0_i32_0 : i32, i32, i32
  }
  func.func @transform_1(%arg0: i32) -> (i32, i32, i32) {
    %c0_i32 = arith.constant 0 : i32
    %c0_i32_0 = arith.constant 0 : i32
    %c0_i32_1 = arith.constant 0 : i32
    return %c0_i32, %arg0, %c0_i32_0 : i32, i32, i32
  }
  func.func @transform_2(%arg0: i32) -> (i32, i32) {
    %c0_i32 = arith.constant 0 : i32
    %c0_i32_0 = arith.constant 0 : i32
    return %arg0, %c0_i32 : i32, i32
  }
}

</mosaic_0001>

<llo_original>
// kernel: tpu_custom_call.1
$region0: #{tpu_custom_call.1}
  #allocation0 [shape = 'u32[]', space=smem, size = 0x4, offset = 0x4, fixed_abs, tag = 'smem constant byte address 0x4 - core index']
  #allocation1 [shape = 'u32[144,128]{1,0:T(1,128)}', space=vmem, size = 0x12000, scoped, tag = 'internal scratch']
  %s0 = inlined_call_operand.hbm [shape: f32[4,8,128], index: 0, kind: input, shape index: {}]
  %s1 = inlined_call_operand.hbm [shape: f32[4,8,128], index: 1, kind: input, shape index: {}]
  %s2 = inlined_call_operand.hbm [shape: f32[8,128], index: 2, kind: output, shape index: {}]
  %s3 = sld [smem:[#allocation0]]
  $region26: #{tpu_custom_call.1} parent=0
    _
  %s5 = ssub.s32 1, %s3
  %s6 = scalar_select 0, %s5, %s3
  $region1: #{tpu_custom_call.1} parent=0
    #allocation2 [shape = 'u8[16384]{0}', space=vmem, size = 0x4000, scoped, tag = 'input window, operand 0, single buffered']
    #allocation3 [shape = 's32[1]{0}', space=sflag, size = 0x4, scoped, tag = 'scoped memory for tpu_custom_call.1']
    #allocation4 [shape = 's32[1]{0}', space=sflag, size = 0x4, scoped, tag = 'scoped memory for tpu_custom_call.1']
    #allocation5 [shape = 'u8[16384]{0}', space=vmem, size = 0x4000, scoped, tag = 'input window, operand 1, single buffered']
    #allocation6 [shape = 's32[1]{0}', space=sflag, size = 0x4, scoped, tag = 'scoped memory for tpu_custom_call.1']
    #allocation7 [shape = 'u8[4096]{0}', space=vmem, size = 0x1000, scoped, tag = 'output window, operand 0, single buffered']
    %7 = vsyncpa [#allocation3], 0
    %8 = vsyncpa [#allocation6], 0
    %9 = vsyncpa [#allocation4], 0
    // Predicated region
    $region2: #{tpu_custom_call.1} parent=1 // pred_check
      _
    $region3: #{tpu_custom_call.1} parent=1 // pred_check_branch
      %11 = sbr.rel (0) target = $region5
    $region4: #{tpu_custom_call.1} parent=1 // pred_region
      %s13 = ssub.s32 512, 512
      %14 = vsyncadd [#allocation3], %s13
      %s15 = sshll.u32 [#allocation2], 4
      %s16 = int_to_ptr.vmem [resolvable:$true] %s15
      %21 = dma.hbm_to_vmem [thread:$0]  %s0, 512, %s16, [#allocation3], 128, 128, 8
    $region5: #{tpu_custom_call.1} parent=1 // pred_fallthru
      _
    // Predicated region
    $region6: #{tpu_custom_call.1} parent=1 // pred_check
      _
    $region7: #{tpu_custom_call.1} parent=1 // pred_check_branch
      %23 = sbr.rel (0) target = $region9
    $region8: #{tpu_custom_call.1} parent=1 // pred_region
      %s25 = ssub.s32 512, 512
      %26 = vsyncadd [#allocation6], %s25
      %s27 = sshll.u32 [#allocation5], 4
      %s28 = int_to_ptr.vmem [resolvable:$true] %s27
      %33 = dma.hbm_to_vmem [thread:$0]  %s1, 512, %s28, [#allocation6], 128, 128, 8
    $region9: #{tpu_custom_call.1} parent=1 // pred_fallthru
      _
    // Predicated region
    $region10: #{tpu_custom_call.1} parent=1 // pred_check
      _
    $region11: #{tpu_custom_call.1} parent=1 // pred_check_branch
      %35 = sbr.rel (0) target = $region13
    $region12: #{tpu_custom_call.1} parent=1 // pred_region
      %36 = dma.done [#allocation3], 512
    $region13: #{tpu_custom_call.1} parent=1 // pred_fallthru
      _
    // Predicated region
    $region14: #{tpu_custom_call.1} parent=1 // pred_check
      _
    $region15: #{tpu_custom_call.1} parent=1 // pred_check_branch
      %38 = sbr.rel (0) target = $region17
    $region16: #{tpu_custom_call.1} parent=1 // pred_region
      %39 = dma.done [#allocation6], 512
    $region17: #{tpu_custom_call.1} parent=1 // pred_fallthru
      _
    %v40 = vld [vmem:[#allocation2] sm:$0xff]
    %v41 = vld [vmem:[#allocation2 + $0x8] sm:$0xff]
    %v42 = vld [vmem:[#allocation2 + $0x10] sm:$0xff]
    %v43 = vld [vmem:[#allocation2 + $0x18] sm:$0xff]
    %v44 = vld [vmem:[#allocation5] sm:$0xff]
    %v45 = vld [vmem:[#allocation5 + $0x8] sm:$0xff]
    %v46 = vld [vmem:[#allocation5 + $0x10] sm:$0xff]
    %v47 = vld [vmem:[#allocation5 + $0x18] sm:$0xff]
    %v48 = vmul.f32 %v42, 0.5
    %v49 = vmul.f32 %v43, 0.5
    %v50 = vmul.f32 %v46, 0.5
    %v51 = vmul.f32 %v47, 0.5
    %v52 = vsub.f32 %v40, %v48
    %v53 = vsub.f32 %v44, %v50
    %v54 = vmax.f32 %v52, %v53
    %v55 = vsub.f32 %v41, %v49
    %v56 = vsub.f32 %v45, %v51
    %v57 = vmax.f32 %v55, %v56
    %v58 = vadd.f32 %v40, %v48
    %v59 = vadd.f32 %v44, %v50
    %v60 = vmin.f32 %v58, %v59
    %v61 = vadd.f32 %v41, %v49
    %v62 = vadd.f32 %v45, %v51
    %v63 = vmin.f32 %v61, %v62
    %v64 = vmul.f32 %v42, %v43
    %v65 = vmul.f32 %v46, %v47
    %vm66 = vcmp.lt.f32.partialorder %v54, %v60
    %vm67 = vcmp.lt.f32.partialorder %v57, %v63
    %vm68 = vmand %vm66, %vm67
    %v69 = vsel %vm68, 1, 0
    %v70 = vcvt.s32.f32 %v69
    %v71 = vsub.f32 %v60, %v54
    %v72 = vsub.f32 %v63, %v57
    %v73 = vmul.f32 %v71, %v72
    %v74 = vmul.f32 %v73, %v70
    %v75 = vadd.f32 %v64, %v65
    %v76 = vsub.f32 %v75, %v74
    %v77 = vadd.f32 %v76, 1e-16
    %v78 = vrcp.pop %v77
    %v79 = vmul.f32 %v74, %v78
    %v80 = vmul.f32 %v79, %v79
    %v81 = vsub.f32 1.0, %v80
    %82 = vst [vmem:[#allocation7] sm:$0xff] %v81
    // Predicated region
    $region18: #{tpu_custom_call.1} parent=1 // pred_check
      _
    $region19: #{tpu_custom_call.1} parent=1 // pred_check_branch
      %84 = sbr.rel (0) target = $region21
    $region20: #{tpu_custom_call.1} parent=1 // pred_region
      %s86 = ssub.s32 128, 128
      %87 = vsyncadd [#allocation4], %s86
      %s89 = sshll.u32 [#allocation7], 4
      %s90 = int_to_ptr.vmem [resolvable:$true] %s89
      %92 = dma.vmem_to_hbm [thread:$0]  %s90, 128, %s2, [#allocation4]
    $region21: #{tpu_custom_call.1} parent=1 // pred_fallthru
      _
    // Predicated region
    $region22: #{tpu_custom_call.1} parent=1 // pred_check
      _
    $region23: #{tpu_custom_call.1} parent=1 // pred_check_branch
      %94 = sbr.rel (0) target = $region25
    $region24: #{tpu_custom_call.1} parent=1 // pred_region
      %95 = dma.done [#allocation4], 128
    $region25: #{tpu_custom_call.1} parent=1 // pred_fallthru
      _
    %96 = vsyncpa [#allocation3], 1
    %97 = vsyncpa [#allocation6], 1
    %98 = vsyncpa [#allocation4], 1

</llo_original>
